<compile_context>
chip_gen: v6e
topology: v6e:2x2x1
jax: 0.10.0
libtpu: 0.0.40
codegen_flags: <defaults>
</compile_context>

<pallas_src>
import jax
import jax.numpy as jnp
from jax.experimental import pallas as pl
from jax.experimental.pallas import tpu as pltpu


def lstm_kernel(x_ref, we_ref, be_ref, wf_ref, bf_ref, h0_ref, c0_ref,
                wo_ref, bo_ref, out_ref, hout_ref, cout_ref):
    n_layers = h0_ref.shape[0]
    batch = h0_ref.shape[1]
    hidden = h0_ref.shape[-1]
    mm_dtype = we_ref.dtype  # bf16 matmul inputs, f32 accumulation

    # embed: Linear(input_size -> hidden_size)
    h_in = (jnp.dot(x_ref[...].astype(mm_dtype), we_ref[...],
                    preferred_element_type=jnp.float32) + be_ref[...])

    # lane mask picking the g band (lanes [2H, 3H)) of the (B, 4H) gates tile
    lane = jax.lax.broadcasted_iota(jnp.int32, (batch, 4 * hidden), 1)
    g_band = (lane >= 2 * hidden) & (lane < 3 * hidden)

    # stacked LSTMCells (PyTorch nn.LSTMCell semantics, gate order i,f,g,o)
    for layer in range(n_layers):
        h_prev = h0_ref[layer]
        c_prev = c0_ref[layer]
        # single fused gate matmul: [h_in, h_prev] @ [W_ih^T; W_hh^T] + (b_ih+b_hh)
        hh = jnp.concatenate([h_in, h_prev], axis=-1).astype(mm_dtype)
        gates = (jnp.dot(hh, wf_ref[layer], preferred_element_type=jnp.float32)
                 + bf_ref[layer])
        # full-width nonlinearities; tanh band selected by lane mask
        act = jnp.where(g_band, jnp.tanh(gates), jax.nn.sigmoid(gates))
        i_g = act[:, 0 * hidden:1 * hidden]
        f_g = act[:, 1 * hidden:2 * hidden]
        g_g = act[:, 2 * hidden:3 * hidden]
        o_g = act[:, 3 * hidden:4 * hidden]
        c_new = f_g * c_prev + i_g * g_g
        h_new = o_g * jnp.tanh(c_new)
        hout_ref[layer] = h_new
        cout_ref[layer] = c_new
        h_in = h_new

    # output head: Linear(hidden -> output) followed by Tanh
    out_ref[...] = jnp.tanh(
        jnp.dot(h_in.astype(mm_dtype), wo_ref[...],
                preferred_element_type=jnp.float32) + bo_ref[...])


def _full_spec(shape):
    # whole array as one VMEM block (shapes are tiny); index_map for grid=()
    return pl.BlockSpec(shape, lambda: (0,) * len(shape))


def lstm_forward(x, params, h0, c0):
    (we, be, wf, bf, wo, bo) = params
    B = x.shape[0]
    L, _, H = h0.shape
    O = wo.shape[-1]

    inputs = (x, we, be, wf, bf, h0, c0, wo, bo)
    out_shapes = (
        jax.ShapeDtypeStruct((B, O), jnp.float32),
        jax.ShapeDtypeStruct((L, B, H), jnp.float32),
        jax.ShapeDtypeStruct((L, B, H), jnp.float32),
    )
    return pl.pallas_call(
        lstm_kernel,
        out_shape=out_shapes,
        in_specs=[_full_spec(a.shape) for a in inputs],
        out_specs=tuple(_full_spec(s.shape) for s in out_shapes),
        # in-place state update: h0 -> h_new, c0 -> c_new
        input_output_aliases={5: 1, 6: 2},
    )(*inputs)


def init_params(key, input_size, output_size, hidden_size, n_layers):
    """Deterministic synthetic parameters (shapes match the torch module),
    pre-fused/pre-transposed for the kernel."""
    ks = jax.random.split(key, 8)
    u = lambda k, shape, scale: jax.random.uniform(
        k, shape, jnp.float32, minval=-scale, maxval=scale)
    # embed: nn.Linear(input_size, hidden_size) -> stored transposed (I, H)
    we = u(ks[0], (input_size, hidden_size), 0.1)
    be = u(ks[1], (1, hidden_size), 0.1)
    # LSTMCell weights, stacked over layers, pre-transposed to (H, 4H)
    wih = u(ks[2], (n_layers, hidden_size, 4 * hidden_size), 0.1)
    whh = u(ks[3], (n_layers, hidden_size, 4 * hidden_size), 0.1)
    bih = u(ks[4], (n_layers, 1, 4 * hidden_size), 0.1)
    bhh = u(ks[5], (n_layers, 1, 4 * hidden_size), 0.1)
    # output head: nn.Linear(hidden_size, output_size) -> stored transposed (H, O)
    wo = u(ks[6], (hidden_size, output_size), 0.1)
    bo = u(ks[7], (1, output_size), 0.1)
    # fuse the two gate matmuls: gates = [h_in, h_prev] @ wf + bf
    wf = jnp.concatenate([wih, whh], axis=1)   # (L, 2H, 4H)
    bf = bih + bhh                             # (L, 1, 4H)
    # matmul weights in bf16 (f32 accumulation in kernel); biases stay f32
    mm = jnp.bfloat16
    return (we.astype(mm), be, wf.astype(mm), bf, wo.astype(mm), bo)


def reference_forward(x, params, h0, c0):
    """Plain-JAX reference mirroring the kernel's math (same bf16 matmul
    inputs, f32 accumulation) for validation."""
    (we, be, wf, bf, wo, bo) = params
    H = h0.shape[-1]
    mm = we.dtype
    h_in = jnp.dot(x.astype(mm), we, preferred_element_type=jnp.float32) + be
    h_list, c_list = [], []
    for l in range(h0.shape[0]):
        hh = jnp.concatenate([h_in, h0[l]], axis=-1).astype(mm)
        gates = jnp.dot(hh, wf[l], preferred_element_type=jnp.float32) + bf[l]
        i_g = jax.nn.sigmoid(gates[:, 0 * H:1 * H])
        f_g = jax.nn.sigmoid(gates[:, 1 * H:2 * H])
        g_g = jnp.tanh(gates[:, 2 * H:3 * H])
        o_g = jax.nn.sigmoid(gates[:, 3 * H:4 * H])
        c_new = f_g * c0[l] + i_g * g_g
        h_new = o_g * jnp.tanh(c_new)
        h_list.append(h_new)
        c_list.append(c_new)
        h_in = h_new
    out = jnp.tanh(jnp.dot(h_in.astype(mm), wo,
                           preferred_element_type=jnp.float32) + bo)
    return out, jnp.stack(h_list), jnp.stack(c_list)


if __name__ == "__main__":
    input_size, output_size, hidden_size, n_layers, batch_size = 16, 8, 32, 2, 8

    key = jax.random.PRNGKey(0)
    kx, kp = jax.random.split(key)
    x = jax.random.normal(kx, (batch_size, input_size), jnp.float32)
    params = init_params(kp, input_size, output_size, hidden_size, n_layers)

    # init_hidden(): zeros for every layer
    h0 = jnp.zeros((n_layers, batch_size, hidden_size), jnp.float32)
    c0 = jnp.zeros((n_layers, batch_size, hidden_size), jnp.float32)

    # reference first (h0/c0 are read-only here; kernel aliases them for its outputs)
    ref_out, ref_h, ref_c = reference_forward(x, params, h0, c0)

    out, h_new, c_new = lstm_forward(x, params, h0, c0)
    jax.block_until_ready((out, h_new, c_new))

    assert jnp.allclose(out, ref_out, atol=1e-5), "output mismatch"
    assert jnp.allclose(h_new, ref_h, atol=1e-5), "hidden state mismatch"
    assert jnp.allclose(c_new, ref_c, atol=1e-5), "cell state mismatch"

    print("KERNEL_OK")
</pallas_src>

<mosaic_0001>
module attributes {stable_mosaic.version = 11 : i64} {
  func.func @lstm_kernel(%arg0: memref<8x16xf32, #tpu.memory_space<vmem>>, %arg1: memref<16x32xbf16, #tpu.memory_space<vmem>>, %arg2: memref<1x32xf32, #tpu.memory_space<vmem>>, %arg3: memref<2x64x128xbf16, #tpu.memory_space<vmem>>, %arg4: memref<2x1x128xf32, #tpu.memory_space<vmem>>, %arg5: memref<2x8x32xf32, #tpu.memory_space<vmem>>, %arg6: memref<2x8x32xf32, #tpu.memory_space<vmem>>, %arg7: memref<32x8xbf16, #tpu.memory_space<vmem>>, %arg8: memref<1x8xf32, #tpu.memory_space<vmem>>, %arg9: memref<8x8xf32, #tpu.memory_space<vmem>>, %arg10: memref<2x8x32xf32, #tpu.memory_space<vmem>>, %arg11: memref<2x8x32xf32, #tpu.memory_space<vmem>>) attributes {dimension_semantics = [], scalar_prefetch = 0 : i64, scratch_operands = 0 : i64, tpu.core_type = #tpu.core_type<tc>} {
    %c0 = arith.constant 0 : index
    %c0_0 = arith.constant 0 : index
    %0 = vector.load %arg0[%c0, %c0_0] : memref<8x16xf32, #tpu.memory_space<vmem>>, vector<8x16xf32>
    %1 = arith.truncf %0 : vector<8x16xf32> to vector<8x16xbf16>
    %c0_1 = arith.constant 0 : index
    %c0_2 = arith.constant 0 : index
    %2 = vector.load %arg1[%c0_1, %c0_2] : memref<16x32xbf16, #tpu.memory_space<vmem>>, vector<16x32xbf16>
    %cst = arith.constant dense<0.000000e+00> : vector<8x32xf32>
    %3 = tpu.matmul %1, %2, %cst {dimension_numbers = #tpu.dot_dimension_numbers<[1], [0], [0], [1], [0, 0, 1, 1], [], []>} : vector<8x16xbf16>, vector<16x32xbf16>, vector<8x32xf32> -> vector<8x32xf32>
    %c0_3 = arith.constant 0 : index
    %c0_4 = arith.constant 0 : index
    %4 = vector.load %arg2[%c0_3, %c0_4] : memref<1x32xf32, #tpu.memory_space<vmem>>, vector<1x32xf32>
    %5 = vector.broadcast %4 : vector<1x32xf32> to vector<8x32xf32>
    %6 = arith.addf %3, %5 : vector<8x32xf32>
    %7 = tpu.iota {dimensions = array<i32: 1>} : vector<8x128xi32>
    %c64_i32 = arith.constant 64 : i32
    %8 = vector.broadcast %c64_i32 : i32 to vector<8x128xi32>
    %9 = arith.cmpi sge, %7, %8 : vector<8x128xi32>
    %c96_i32 = arith.constant 96 : i32
    %10 = vector.broadcast %c96_i32 : i32 to vector<8x128xi32>
    %11 = arith.cmpi slt, %7, %10 : vector<8x128xi32>
    %12 = arith.andi %9, %11 : vector<8x128xi1>
    %c0_5 = arith.constant 0 : index
    %c0_6 = arith.constant 0 : index
    %c0_7 = arith.constant 0 : index
    %13 = vector.load %arg5[%c0_5, %c0_6, %c0_7] : memref<2x8x32xf32, #tpu.memory_space<vmem>>, vector<1x8x32xf32>
    %14 = vector.shape_cast %13 : vector<1x8x32xf32> to vector<8x32xf32>
    %c0_8 = arith.constant 0 : index
    %c0_9 = arith.constant 0 : index
    %c0_10 = arith.constant 0 : index
    %15 = vector.load %arg6[%c0_8, %c0_9, %c0_10] : memref<2x8x32xf32, #tpu.memory_space<vmem>>, vector<1x8x32xf32>
    %16 = vector.shape_cast %15 : vector<1x8x32xf32> to vector<8x32xf32>
    %17 = tpu.concatenate %6, %14 in 1 : vector<8x32xf32>, vector<8x32xf32> -> vector<8x64xf32>
    %18 = arith.truncf %17 : vector<8x64xf32> to vector<8x64xbf16>
    %c0_11 = arith.constant 0 : index
    %c0_12 = arith.constant 0 : index
    %c0_13 = arith.constant 0 : index
    %19 = vector.load %arg3[%c0_11, %c0_12, %c0_13] : memref<2x64x128xbf16, #tpu.memory_space<vmem>>, vector<1x64x128xbf16>
    %20 = vector.shape_cast %19 : vector<1x64x128xbf16> to vector<64x128xbf16>
    %cst_14 = arith.constant dense<0.000000e+00> : vector<8x128xf32>
    %21 = tpu.matmul %18, %20, %cst_14 {dimension_numbers = #tpu.dot_dimension_numbers<[1], [0], [0], [1], [0, 0, 1, 1], [], []>} : vector<8x64xbf16>, vector<64x128xbf16>, vector<8x128xf32> -> vector<8x128xf32>
    %c0_15 = arith.constant 0 : index
    %c0_16 = arith.constant 0 : index
    %c0_17 = arith.constant 0 : index
    %22 = vector.load %arg4[%c0_15, %c0_16, %c0_17] : memref<2x1x128xf32, #tpu.memory_space<vmem>>, vector<1x1x128xf32>
    %23 = vector.shape_cast %22 : vector<1x1x128xf32> to vector<1x128xf32>
    %24 = vector.broadcast %23 : vector<1x128xf32> to vector<8x128xf32>
    %25 = arith.addf %21, %24 : vector<8x128xf32>
    %26 = math.tanh %25 : vector<8x128xf32>
    %27 = arith.negf %25 : vector<8x128xf32>
    %28 = math.exp %27 : vector<8x128xf32>
    %cst_18 = arith.constant 1.000000e+00 : f32
    %29 = vector.broadcast %cst_18 : f32 to vector<8x128xf32>
    %30 = arith.addf %29, %28 : vector<8x128xf32>
    %31 = arith.divf %29, %30 : vector<8x128xf32>
    %32 = arith.select %12, %26, %31 : vector<8x128xi1>, vector<8x128xf32>
    %33 = vector.extract_strided_slice %32 {offsets = [0, 0], sizes = [8, 32], strides = [1, 1]} : vector<8x128xf32> to vector<8x32xf32>
    %34 = vector.extract_strided_slice %32 {offsets = [0, 32], sizes = [8, 32], strides = [1, 1]} : vector<8x128xf32> to vector<8x32xf32>
    %35 = vector.extract_strided_slice %32 {offsets = [0, 64], sizes = [8, 32], strides = [1, 1]} : vector<8x128xf32> to vector<8x32xf32>
    %36 = vector.extract_strided_slice %32 {offsets = [0, 96], sizes = [8, 32], strides = [1, 1]} : vector<8x128xf32> to vector<8x32xf32>
    %37 = arith.mulf %34, %16 : vector<8x32xf32>
    %38 = arith.mulf %33, %35 : vector<8x32xf32>
    %39 = arith.addf %37, %38 : vector<8x32xf32>
    %40 = math.tanh %39 : vector<8x32xf32>
    %41 = arith.mulf %36, %40 : vector<8x32xf32>
    %c0_19 = arith.constant 0 : index
    %c0_20 = arith.constant 0 : index
    %c0_21 = arith.constant 0 : index
    %42 = vector.load %arg10[%c0_19, %c0_20, %c0_21] : memref<2x8x32xf32, #tpu.memory_space<vmem>>, vector<1x8x32xf32>
    %43 = vector.shape_cast %42 : vector<1x8x32xf32> to vector<8x32xf32>
    %44 = vector.shape_cast %41 : vector<8x32xf32> to vector<1x8x32xf32>
    tpu.vector_store %arg10[%c0_19, %c0_20, %c0_21], %44 {strides = array<i32>} : memref<2x8x32xf32, #tpu.memory_space<vmem>>, vector<1x8x32xf32>,
    %c0_22 = arith.constant 0 : index
    %c0_23 = arith.constant 0 : index
    %c0_24 = arith.constant 0 : index
    %45 = vector.load %arg11[%c0_22, %c0_23, %c0_24] : memref<2x8x32xf32, #tpu.memory_space<vmem>>, vector<1x8x32xf32>
    %46 = vector.shape_cast %45 : vector<1x8x32xf32> to vector<8x32xf32>
    %47 = vector.shape_cast %39 : vector<8x32xf32> to vector<1x8x32xf32>
    tpu.vector_store %arg11[%c0_22, %c0_23, %c0_24], %47 {strides = array<i32>} : memref<2x8x32xf32, #tpu.memory_space<vmem>>, vector<1x8x32xf32>,
    %c1 = arith.constant 1 : index
    %c0_25 = arith.constant 0 : index
    %c0_26 = arith.constant 0 : index
    %48 = vector.load %arg5[%c1, %c0_25, %c0_26] : memref<2x8x32xf32, #tpu.memory_space<vmem>>, vector<1x8x32xf32>
    %49 = vector.shape_cast %48 : vector<1x8x32xf32> to vector<8x32xf32>
    %c1_27 = arith.constant 1 : index
    %c0_28 = arith.constant 0 : index
    %c0_29 = arith.constant 0 : index
    %50 = vector.load %arg6[%c1_27, %c0_28, %c0_29] : memref<2x8x32xf32, #tpu.memory_space<vmem>>, vector<1x8x32xf32>
    %51 = vector.shape_cast %50 : vector<1x8x32xf32> to vector<8x32xf32>
    %52 = tpu.concatenate %41, %49 in 1 : vector<8x32xf32>, vector<8x32xf32> -> vector<8x64xf32>
    %53 = arith.truncf %52 : vector<8x64xf32> to vector<8x64xbf16>
    %c1_30 = arith.constant 1 : index
    %c0_31 = arith.constant 0 : index
    %c0_32 = arith.constant 0 : index
    %54 = vector.load %arg3[%c1_30, %c0_31, %c0_32] : memref<2x64x128xbf16, #tpu.memory_space<vmem>>, vector<1x64x128xbf16>
    %55 = vector.shape_cast %54 : vector<1x64x128xbf16> to vector<64x128xbf16>
    %cst_33 = arith.constant dense<0.000000e+00> : vector<8x128xf32>
    %56 = tpu.matmul %53, %55, %cst_33 {dimension_numbers = #tpu.dot_dimension_numbers<[1], [0], [0], [1], [0, 0, 1, 1], [], []>} : vector<8x64xbf16>, vector<64x128xbf16>, vector<8x128xf32> -> vector<8x128xf32>
    %c1_34 = arith.constant 1 : index
    %c0_35 = arith.constant 0 : index
    %c0_36 = arith.constant 0 : index
    %57 = vector.load %arg4[%c1_34, %c0_35, %c0_36] : memref<2x1x128xf32, #tpu.memory_space<vmem>>, vector<1x1x128xf32>
    %58 = vector.shape_cast %57 : vector<1x1x128xf32> to vector<1x128xf32>
    %59 = vector.broadcast %58 : vector<1x128xf32> to vector<8x128xf32>
    %60 = arith.addf %56, %59 : vector<8x128xf32>
    %61 = math.tanh %60 : vector<8x128xf32>
    %62 = arith.negf %60 : vector<8x128xf32>
    %63 = math.exp %62 : vector<8x128xf32>
    %cst_37 = arith.constant 1.000000e+00 : f32
    %64 = vector.broadcast %cst_37 : f32 to vector<8x128xf32>
    %65 = arith.addf %64, %63 : vector<8x128xf32>
    %66 = arith.divf %64, %65 : vector<8x128xf32>
    %67 = arith.select %12, %61, %66 : vector<8x128xi1>, vector<8x128xf32>
    %68 = vector.extract_strided_slice %67 {offsets = [0, 0], sizes = [8, 32], strides = [1, 1]} : vector<8x128xf32> to vector<8x32xf32>
    %69 = vector.extract_strided_slice %67 {offsets = [0, 32], sizes = [8, 32], strides = [1, 1]} : vector<8x128xf32> to vector<8x32xf32>
    %70 = vector.extract_strided_slice %67 {offsets = [0, 64], sizes = [8, 32], strides = [1, 1]} : vector<8x128xf32> to vector<8x32xf32>
    %71 = vector.extract_strided_slice %67 {offsets = [0, 96], sizes = [8, 32], strides = [1, 1]} : vector<8x128xf32> to vector<8x32xf32>
    %72 = arith.mulf %69, %51 : vector<8x32xf32>
    %73 = arith.mulf %68, %70 : vector<8x32xf32>
    %74 = arith.addf %72, %73 : vector<8x32xf32>
    %75 = math.tanh %74 : vector<8x32xf32>
    %76 = arith.mulf %71, %75 : vector<8x32xf32>
    %c1_38 = arith.constant 1 : index
    %c0_39 = arith.constant 0 : index
    %c0_40 = arith.constant 0 : index
    %77 = vector.load %arg10[%c1_38, %c0_39, %c0_40] : memref<2x8x32xf32, #tpu.memory_space<vmem>>, vector<1x8x32xf32>
    %78 = vector.shape_cast %77 : vector<1x8x32xf32> to vector<8x32xf32>
    %79 = vector.shape_cast %76 : vector<8x32xf32> to vector<1x8x32xf32>
    tpu.vector_store %arg10[%c1_38, %c0_39, %c0_40], %79 {strides = array<i32>} : memref<2x8x32xf32, #tpu.memory_space<vmem>>, vector<1x8x32xf32>,
    %c1_41 = arith.constant 1 : index
    %c0_42 = arith.constant 0 : index
    %c0_43 = arith.constant 0 : index
    %80 = vector.load %arg11[%c1_41, %c0_42, %c0_43] : memref<2x8x32xf32, #tpu.memory_space<vmem>>, vector<1x8x32xf32>
    %81 = vector.shape_cast %80 : vector<1x8x32xf32> to vector<8x32xf32>
    %82 = vector.shape_cast %74 : vector<8x32xf32> to vector<1x8x32xf32>
    tpu.vector_store %arg11[%c1_41, %c0_42, %c0_43], %82 {strides = array<i32>} : memref<2x8x32xf32, #tpu.memory_space<vmem>>, vector<1x8x32xf32>,
    %83 = arith.truncf %76 : vector<8x32xf32> to vector<8x32xbf16>
    %c0_44 = arith.constant 0 : index
    %c0_45 = arith.constant 0 : index
    %84 = vector.load %arg7[%c0_44, %c0_45] : memref<32x8xbf16, #tpu.memory_space<vmem>>, vector<32x8xbf16>
    %cst_46 = arith.constant dense<0.000000e+00> : vector<8x8xf32>
    %85 = tpu.matmul %83, %84, %cst_46 {dimension_numbers = #tpu.dot_dimension_numbers<[1], [0], [0], [1], [0, 0, 1, 1], [], []>} : vector<8x32xbf16>, vector<32x8xbf16>, vector<8x8xf32> -> vector<8x8xf32>
    %c0_47 = arith.constant 0 : index
    %c0_48 = arith.constant 0 : index
    %86 = vector.load %arg8[%c0_47, %c0_48] : memref<1x8xf32, #tpu.memory_space<vmem>>, vector<1x8xf32>
    %87 = vector.broadcast %86 : vector<1x8xf32> to vector<8x8xf32>
    %88 = arith.addf %85, %87 : vector<8x8xf32>
    %89 = math.tanh %88 : vector<8x8xf32>
    %c0_49 = arith.constant 0 : index
    %c0_50 = arith.constant 0 : index
    %90 = vector.load %arg9[%c0_49, %c0_50] : memref<8x8xf32, #tpu.memory_space<vmem>>, vector<8x8xf32>
    tpu.vector_store %arg9[%c0_49, %c0_50], %89 {strides = array<i32>} : memref<8x8xf32, #tpu.memory_space<vmem>>, vector<8x8xf32>,
    return
  }
}

</mosaic_0001>

<llo_original>
// kernel: tpu_custom_call.1
$region0: #{tpu_custom_call.1}
  #allocation0 [shape = 'u32[]', space=smem, size = 0x4, offset = 0x4, fixed_abs, tag = 'smem constant byte address 0x4 - core index']
  #allocation1 [shape = 'u32[144,128]{1,0:T(1,128)}', space=vmem, size = 0x12000, scoped, tag = 'internal scratch']
  %s0 = inlined_call_operand.vmem [shape: f32[8,16], index: 0, kind: input, shape index: {}]
  %s1 = inlined_call_operand.vmem [shape: bf16[16,32], index: 1, kind: input, shape index: {}]
  %s2 = inlined_call_operand.vmem [shape: f32[1,32], index: 2, kind: input, shape index: {}]
  %s3 = inlined_call_operand.vmem [shape: bf16[2,64,128], index: 3, kind: input, shape index: {}]
  %s4 = inlined_call_operand.vmem [shape: f32[2,1,128], index: 4, kind: input, shape index: {}]
  %s5 = inlined_call_operand.hbm [shape: f32[2,8,32], index: 5, kind: input, shape index: {}, may-alias: {5,10}]
  %s6 = inlined_call_operand.hbm [shape: f32[2,8,32], index: 6, kind: input, shape index: {}, may-alias: {6,11}]
  %s7 = inlined_call_operand.vmem [shape: bf16[32,8], index: 7, kind: input, shape index: {}]
  %s8 = inlined_call_operand.vmem [shape: f32[1,8], index: 8, kind: input, shape index: {}]
  %s9 = inlined_call_operand.hbm [shape: f32[8,8], index: 9, kind: output, shape index: {0}]
  %s10 = inlined_call_operand.hbm [shape: f32[2,8,32], index: 10, kind: output, shape index: {1}, may-alias: {5,10}]
  %s11 = inlined_call_operand.hbm [shape: f32[2,8,32], index: 11, kind: output, shape index: {2}, may-alias: {6,11}]
  %12 = xla_tuple %s9, %s10, %s11
  %s13 = sld [smem:[#allocation0]]
  $region70: #{tpu_custom_call.1} parent=0
    _
  %s15 = ssub.s32 1, %s13
  %s16 = scalar_select 0, %s15, %s13
  $region1: #{tpu_custom_call.1} parent=0
    #allocation2 [shape = 'u8[8192]{0}', space=vmem, size = 0x2000, scoped, tag = 'input window, operand 5, single buffered']
    #allocation3 [shape = 's32[1]{0}', space=sflag, size = 0x4, scoped, tag = 'scoped memory for tpu_custom_call.1']
    #allocation4 [shape = 's32[1]{0}', space=sflag, size = 0x4, scoped, tag = 'scoped memory for tpu_custom_call.1']
    #allocation5 [shape = 'u8[8192]{0}', space=vmem, size = 0x2000, scoped, tag = 'input window, operand 6, single buffered']
    #allocation6 [shape = 's32[1]{0}', space=sflag, size = 0x4, scoped, tag = 'scoped memory for tpu_custom_call.1']
    #allocation7 [shape = 'u8[4096]{0}', space=vmem, size = 0x1000, scoped, tag = 'output window, operand 0, single buffered']
    #allocation8 [shape = 'u8[8192]{0}', space=vmem, size = 0x2000, scoped, tag = 'output window, operand 1, single buffered']
    #allocation9 [shape = 's32[1]{0}', space=sflag, size = 0x4, scoped, tag = 'scoped memory for tpu_custom_call.1']
    #allocation10 [shape = 'u8[8192]{0}', space=vmem, size = 0x2000, scoped, tag = 'output window, operand 2, single buffered']
    %17 = vsyncpa [#allocation3], 0
    %18 = vsyncpa [#allocation6], 0
    %19 = vsyncpa [#allocation4], 0
    %20 = vsyncpa [#allocation9], 0
    // Predicated region
    $region2: #{tpu_custom_call.1} parent=1 // pred_check
      _
    $region3: #{tpu_custom_call.1} parent=1 // pred_check_branch
      %22 = sbr.rel (0) target = $region5
    $region4: #{tpu_custom_call.1} parent=1 // pred_region
      _
    $region5: #{tpu_custom_call.1} parent=1 // pred_fallthru
      _
    // Predicated region
    $region6: #{tpu_custom_call.1} parent=1 // pred_check
      _
    $region7: #{tpu_custom_call.1} parent=1 // pred_check_branch
      %24 = sbr.rel (0) target = $region9
    $region8: #{tpu_custom_call.1} parent=1 // pred_region
      _
    $region9: #{tpu_custom_call.1} parent=1 // pred_fallthru
      _
    // Predicated region
    $region10: #{tpu_custom_call.1} parent=1 // pred_check
      _
    $region11: #{tpu_custom_call.1} parent=1 // pred_check_branch
      %26 = sbr.rel (0) target = $region13
    $region12: #{tpu_custom_call.1} parent=1 // pred_region
      _
    $region13: #{tpu_custom_call.1} parent=1 // pred_fallthru
      _
    // Predicated region
    $region14: #{tpu_custom_call.1} parent=1 // pred_check
      _
    $region15: #{tpu_custom_call.1} parent=1 // pred_check_branch
      %28 = sbr.rel (0) target = $region17
    $region16: #{tpu_custom_call.1} parent=1 // pred_region
      _
    $region17: #{tpu_custom_call.1} parent=1 // pred_fallthru
      _
    // Predicated region
    $region18: #{tpu_custom_call.1} parent=1 // pred_check
      _
    $region19: #{tpu_custom_call.1} parent=1 // pred_check_branch
      %30 = sbr.rel (0) target = $region21
    $region20: #{tpu_custom_call.1} parent=1 // pred_region
      _
    $region21: #{tpu_custom_call.1} parent=1 // pred_fallthru
      _
    // Predicated region
    $region22: #{tpu_custom_call.1} parent=1 // pred_check
      _
    $region23: #{tpu_custom_call.1} parent=1 // pred_check_branch
      %32 = sbr.rel (0) target = $region25
    $region24: #{tpu_custom_call.1} parent=1 // pred_region
      %s34 = ssub.s32 256, 256
      %35 = vsyncadd [#allocation3], %s34
      %s36 = sshll.u32 [#allocation2], 4
      %s37 = int_to_ptr.vmem [resolvable:$true] %s36
      %42 = dma.hbm_to_vmem [thread:$0]  %s5, 256, %s37, [#allocation3], 128, 128, 8
    $region25: #{tpu_custom_call.1} parent=1 // pred_fallthru
      _
    // Predicated region
    $region26: #{tpu_custom_call.1} parent=1 // pred_check
      _
    $region27: #{tpu_custom_call.1} parent=1 // pred_check_branch
      %44 = sbr.rel (0) target = $region29
    $region28: #{tpu_custom_call.1} parent=1 // pred_region
      %s46 = ssub.s32 256, 256
      %47 = vsyncadd [#allocation6], %s46
      %s48 = sshll.u32 [#allocation5], 4
      %s49 = int_to_ptr.vmem [resolvable:$true] %s48
      %54 = dma.hbm_to_vmem [thread:$0]  %s6, 256, %s49, [#allocation6], 128, 128, 8
    $region29: #{tpu_custom_call.1} parent=1 // pred_fallthru
      _
    // Predicated region
    $region30: #{tpu_custom_call.1} parent=1 // pred_check
      _
    $region31: #{tpu_custom_call.1} parent=1 // pred_check_branch
      %56 = sbr.rel (0) target = $region33
    $region32: #{tpu_custom_call.1} parent=1 // pred_region
      _
    $region33: #{tpu_custom_call.1} parent=1 // pred_fallthru
      _
    // Predicated region
    $region34: #{tpu_custom_call.1} parent=1 // pred_check
      _
    $region35: #{tpu_custom_call.1} parent=1 // pred_check_branch
      %58 = sbr.rel (0) target = $region37
    $region36: #{tpu_custom_call.1} parent=1 // pred_region
      _
    $region37: #{tpu_custom_call.1} parent=1 // pred_fallthru
      _
    // Predicated region
    $region38: #{tpu_custom_call.1} parent=1 // pred_check
      _
    $region39: #{tpu_custom_call.1} parent=1 // pred_check_branch
      %60 = sbr.rel (0) target = $region41
    $region40: #{tpu_custom_call.1} parent=1 // pred_region
      %61 = dma.done [#allocation3], 256
    $region41: #{tpu_custom_call.1} parent=1 // pred_fallthru
      _
    // Predicated region
    $region42: #{tpu_custom_call.1} parent=1 // pred_check
      _
    $region43: #{tpu_custom_call.1} parent=1 // pred_check_branch
      %63 = sbr.rel (0) target = $region45
    $region44: #{tpu_custom_call.1} parent=1 // pred_region
      %64 = dma.done [#allocation6], 256
    $region45: #{tpu_custom_call.1} parent=1 // pred_fallthru
      _
    %v66 = vld [vmem:[%s0] sm:$0xff]
    %v67 = vpack.c.bf16 %v66, %v66
    %v68 = vld [vmem:[%s1] sm:$0xf]
    %v69 = vld [vmem:[%s1 + $0x4] sm:$0xf]
    %v70 = vld [vmem:[%s2] sm:$0x1]
    %v72 = vlaneseq
    %v73 = vshrl.u32 %v72, 7
    %v74 = vsub.s32 0, %v73
    %v75 = vrot.slane %v70, %v74
    %v79 = vunpack.c.l.b16 %v68
    %v80 = vunpack.c.l.b16 %v69
    %v81 = vpack.c.b16 %v80, %v79
    %vm83 = vcmask 130048
    %v85 = vsel %vm83, %v67, 0
    %87 = vmatprep.subr.bf16.mxu0 0
    %88 = vmatpush1.bf16.msra.mxu0 0
    %89 = vmatprep.subr.bf16.mxu0 0
    %90 = vmatpush1.bf16.msra.mxu0 0
    %91 = vmatprep.subr.bf16.mxu0 0
    %92 = vmatpush1.bf16.msra.mxu0 0
    %93 = vmatprep.subr.bf16.mxu0 0
    %94 = vmatpush1.bf16.msra.mxu0 0
    %95 = vmatprep.subr.bf16.mxu0 0
    %96 = vmatpush1.bf16.msra.mxu0 0
    %97 = vmatprep.subr.bf16.mxu0 0
    %98 = vmatpush1.bf16.msra.mxu0 0
    %99 = vmatprep.subr.bf16.mxu0 0
    %100 = vmatpush1.bf16.msra.mxu0 0
    %101 = vmatprep.subr.bf16.mxu0 0
    %102 = vmatpush1.bf16.msra.mxu0 %v81
    %103 = vmatprep.subr.bf16.mxu0 0
    %104 = vmatpush2.bf16.msra.mxu0 0
    %105 = vmatprep.subr.bf16.mxu0 0
    %106 = vmatpush2.bf16.msra.mxu0 0
    %107 = vmatprep.subr.bf16.mxu0 0
    %108 = vmatpush2.bf16.msra.mxu0 0
    %109 = vmatprep.subr.bf16.mxu0 0
    %110 = vmatpush2.bf16.msra.mxu0 0
    %111 = vmatprep.subr.bf16.mxu0 0
    %112 = vmatpush2.bf16.msra.mxu0 0
    %113 = vmatprep.subr.bf16.mxu0 0
    %114 = vmatpush2.bf16.msra.mxu0 0
    %115 = vmatprep.subr.bf16.mxu0 0
    %116 = vmatpush2.bf16.msra.mxu0 0
    %117 = vmatprep.subr.bf16.mxu0 0
    %118 = vmatpush2.bf16.msra.mxu0 0
    %119 = vmatprep.mubr.bf16.mxu0 0
    %120 = vmatmul.mubr.bf16.gmra.mxu0 %v85
    %v121 = vpop.f32.mrf.mxu0
    %v122 = vadd.f32 %v75, %v121
    %v123 = vpop.f32.mrf.mxu0
    %v124 = vpop.f32.mrf.mxu0
    %v125 = vpop.f32.mrf.mxu0
    %126 = vdwg.mxu0
    %v127 = vlaneseq
    %v128 = vand.u32 %v127, 127
    %vm129 = vcmp.ge.s32.totalorder %v128, 64
    %vm130 = vcmp.lt.s32.totalorder %v128, 96
    %vm131 = vmand %vm129, %vm130
    %v132 = vld [vmem:[#allocation2] sm:$0xff]
    %v133 = vld [vmem:[#allocation5] sm:$0xff]
    %135 = vrot.lane.b32.xlu0 %v132, 32
    %v136 = vpop.permute.xlu0 %135
    %vm138 = vcmask 261120
    %v139 = vsel %vm138, %v122, %v136
    %v140 = vpack.c.bf16 %v139, %v139
    %v141 = vld [vmem:[%s3] sm:$0xf]
    %v142 = vld [vmem:[%s3 + $0x4] sm:$0xf]
    %v143 = vld [vmem:[%s3 + $0x8] sm:$0xf]
    %v144 = vld [vmem:[%s3 + $0xc] sm:$0xf]
    %v145 = vld [vmem:[%s3 + $0x10] sm:$0xf]
    %v146 = vld [vmem:[%s3 + $0x14] sm:$0xf]
    %v147 = vld [vmem:[%s3 + $0x18] sm:$0xf]
    %v148 = vld [vmem:[%s3 + $0x1c] sm:$0xf]
    %v149 = vld [vmem:[%s4] sm:$0x1]
    %v151 = vlaneseq
    %v152 = vshrl.u32 %v151, 7
    %v153 = vsub.s32 0, %v152
    %v154 = vrot.slane %v149, %v153
    %v164 = vunpack.c.l.b16 %v141
    %v165 = vunpack.c.l.b16 %v142
    %v166 = vunpack.c.l.b16 %v143
    %v167 = vunpack.c.l.b16 %v144
    %v168 = vunpack.c.l.b16 %v145
    %v169 = vunpack.c.l.b16 %v146
    %v170 = vunpack.c.l.b16 %v147
    %v171 = vunpack.c.l.b16 %v148
    %v172 = vpack.c.b16 %v165, %v164
    %v173 = vpack.c.b16 %v167, %v166
    %v174 = vpack.c.b16 %v169, %v168
    %v175 = vpack.c.b16 %v171, %v170
    %vm180 = vcmask 523264
    %v182 = vsel %vm180, %v140, 0
    %184 = vmatprep.subr.bf16.mxu0 0
    %185 = vmatpush1.bf16.msra.mxu0 0
    %186 = vmatprep.subr.bf16.mxu0 0
    %187 = vmatpush1.bf16.msra.mxu0 0
    %188 = vmatprep.subr.bf16.mxu0 0
    %189 = vmatpush1.bf16.msra.mxu0 0
    %190 = vmatprep.subr.bf16.mxu0 0
    %191 = vmatpush1.bf16.msra.mxu0 0
    %192 = vmatprep.subr.bf16.mxu0 0
    %193 = vmatpush1.bf16.msra.mxu0 %v175
    %194 = vmatprep.subr.bf16.mxu0 0
    %195 = vmatpush1.bf16.msra.mxu0 %v174
    %196 = vmatprep.subr.bf16.mxu0 0
    %197 = vmatpush1.bf16.msra.mxu0 %v173
    %198 = vmatprep.subr.bf16.mxu0 0
    %199 = vmatpush1.bf16.msra.mxu0 %v172
    %200 = vmatprep.subr.bf16.mxu0 0
    %201 = vmatpush2.bf16.msra.mxu0 0
    %202 = vmatprep.subr.bf16.mxu0 0
    %203 = vmatpush2.bf16.msra.mxu0 0
    %204 = vmatprep.subr.bf16.mxu0 0
    %205 = vmatpush2.bf16.msra.mxu0 0
    %206 = vmatprep.subr.bf16.mxu0 0
    %207 = vmatpush2.bf16.msra.mxu0 0
    %208 = vmatprep.subr.bf16.mxu0 0
    %209 = vmatpush2.bf16.msra.mxu0 0
    %210 = vmatprep.subr.bf16.mxu0 0
    %211 = vmatpush2.bf16.msra.mxu0 0
    %212 = vmatprep.subr.bf16.mxu0 0
    %213 = vmatpush2.bf16.msra.mxu0 0
    %214 = vmatprep.subr.bf16.mxu0 0
    %215 = vmatpush2.bf16.msra.mxu0 0
    %216 = vmatprep.mubr.bf16.mxu0 0
    %217 = vmatmul.mubr.bf16.gmra.mxu0 %v182
    %v218 = vpop.f32.mrf.mxu0
    %v219 = vadd.f32 %v154, %v218
    %v220 = vpop.f32.mrf.mxu0
    %v221 = vpop.f32.mrf.mxu0
    %v222 = vpop.f32.mrf.mxu0
    %223 = vdwg.mxu0
    %v224 = vtanh.pop %v219
    %v225 = vxor.u32 %v219, 2147483648
    %v226 = vmul.f32 %v225, 1.442695
    %v227 = vpow.pop %v226
    %v228 = vadd.f32 %v227, 1.0
    %v229 = vrcp.pop %v228
    %v230 = vmul.f32 1.0, %v229
    %v231 = vsel %vm131, %v224, %v230
    %233 = vrot.lane.b32.xlu0 %v133, 32
    %v234 = vpop.permute.xlu0 %233
    %v236 = vmul.f32 %v231, %v234
    %238 = vrot.lane.b32.xlu0 %v231, 64
    %v239 = vpop.permute.xlu0 %238
    %v241 = vmul.f32 %v231, %v239
    %243 = vrot.lane.b32.xlu0 %v241, 32
    %v244 = vpop.permute.xlu0 %243
    %v246 = vadd.f32 %v236, %v244
    %v247 = vtanh.pop %v246
    %249 = vrot.lane.b32.xlu0 %v247, 64
    %v250 = vpop.permute.xlu0 %249
    %v252 = vmul.f32 %v231, %v250
    %254 = vrot.lane.b32.xlu0 %v252, 32
    %v255 = vpop.permute.xlu0 %254
    %257 = vst.msk [vmem:[#allocation8] sm:$0xff] %vm138, %v255
    %259 = vrot.lane.b32.xlu0 %v246, 96
    %v260 = vpop.permute.xlu0 %259
    %262 = vst.msk [vmem:[#allocation10] sm:$0xff] %vm138, %v260
    %s263 = scalar_lea.vmem [#allocation2], 8
    %v264 = vld [vmem:[%s263] sm:$0xff]
    %s265 = scalar_lea.vmem [#allocation5], 8
    %v266 = vld [vmem:[%s265] sm:$0xff]
    %268 = vrot.lane.b32.xlu0 %v264, 32
    %v269 = vpop.permute.xlu0 %268
    %v271 = vsel %vm138, %v255, %v269
    %v272 = vpack.c.bf16 %v271, %v271
    %s273 = scalar_lea.vmem %s3, 32
    %v274 = vld [vmem:[%s273] sm:$0xf]
    %v275 = vld [vmem:[%s273 + $0x4] sm:$0xf]
    %v276 = vld [vmem:[%s273 + $0x8] sm:$0xf]
    %v277 = vld [vmem:[%s273 + $0xc] sm:$0xf]
    %v278 = vld [vmem:[%s273 + $0x10] sm:$0xf]
    %v279 = vld [vmem:[%s273 + $0x14] sm:$0xf]
    %v280 = vld [vmem:[%s273 + $0x18] sm:$0xf]
    %v281 = vld [vmem:[%s273 + $0x1c] sm:$0xf]
    %s282 = scalar_lea.vmem %s4, 1
    %v283 = vld [vmem:[%s282] sm:$0x1]
    %v285 = vlaneseq
    %v286 = vshrl.u32 %v285, 7
    %v287 = vsub.s32 0, %v286
    %v288 = vrot.slane %v283, %v287
    %v298 = vunpack.c.l.b16 %v274
    %v299 = vunpack.c.l.b16 %v275
    %v300 = vunpack.c.l.b16 %v276
    %v301 = vunpack.c.l.b16 %v277
    %v302 = vunpack.c.l.b16 %v278
    %v303 = vunpack.c.l.b16 %v279
    %v304 = vunpack.c.l.b16 %v280
    %v305 = vunpack.c.l.b16 %v281
    %v306 = vpack.c.b16 %v299, %v298
    %v307 = vpack.c.b16 %v301, %v300
    %v308 = vpack.c.b16 %v303, %v302
    %v309 = vpack.c.b16 %v305, %v304
    %v315 = vsel %vm180, %v272, 0
    %317 = vmatprep.subr.bf16.mxu0 0
    %318 = vmatpush1.bf16.msra.mxu0 0
    %319 = vmatprep.subr.bf16.mxu0 0
    %320 = vmatpush1.bf16.msra.mxu0 0
    %321 = vmatprep.subr.bf16.mxu0 0
    %322 = vmatpush1.bf16.msra.mxu0 0
    %323 = vmatprep.subr.bf16.mxu0 0
    %324 = vmatpush1.bf16.msra.mxu0 0
    %325 = vmatprep.subr.bf16.mxu0 0
    %326 = vmatpush1.bf16.msra.mxu0 %v309
    %327 = vmatprep.subr.bf16.mxu0 0
    %328 = vmatpush1.bf16.msra.mxu0 %v308
    %329 = vmatprep.subr.bf16.mxu0 0
    %330 = vmatpush1.bf16.msra.mxu0 %v307
    %331 = vmatprep.subr.bf16.mxu0 0
    %332 = vmatpush1.bf16.msra.mxu0 %v306
    %333 = vmatprep.subr.bf16.mxu0 0
    %334 = vmatpush2.bf16.msra.mxu0 0
    %335 = vmatprep.subr.bf16.mxu0 0
    %336 = vmatpush2.bf16.msra.mxu0 0
    %337 = vmatprep.subr.bf16.mxu0 0
    %338 = vmatpush2.bf16.msra.mxu0 0
    %339 = vmatprep.subr.bf16.mxu0 0
    %340 = vmatpush2.bf16.msra.mxu0 0
    %341 = vmatprep.subr.bf16.mxu0 0
    %342 = vmatpush2.bf16.msra.mxu0 0
    %343 = vmatprep.subr.bf16.mxu0 0
    %344 = vmatpush2.bf16.msra.mxu0 0
    %345 = vmatprep.subr.bf16.mxu0 0
    %346 = vmatpush2.bf16.msra.mxu0 0
    %347 = vmatprep.subr.bf16.mxu0 0
    %348 = vmatpush2.bf16.msra.mxu0 0
    %349 = vmatprep.mubr.bf16.mxu0 0
    %350 = vmatmul.mubr.bf16.gmra.mxu0 %v315
    %v351 = vpop.f32.mrf.mxu0
    %v352 = vadd.f32 %v288, %v351
    %v353 = vpop.f32.mrf.mxu0
    %v354 = vpop.f32.mrf.mxu0
    %v355 = vpop.f32.mrf.mxu0
    %356 = vdwg.mxu0
    %v357 = vtanh.pop %v352
    %v358 = vxor.u32 %v352, 2147483648
    %v359 = vmul.f32 %v358, 1.442695
    %v360 = vpow.pop %v359
    %v361 = vadd.f32 %v360, 1.0
    %v362 = vrcp.pop %v361
    %v363 = vmul.f32 1.0, %v362
    %v364 = vsel %vm131, %v357, %v363
    %366 = vrot.lane.b32.xlu0 %v266, 32
    %v367 = vpop.permute.xlu0 %366
    %v369 = vmul.f32 %v364, %v367
    %371 = vrot.lane.b32.xlu0 %v364, 64
    %v372 = vpop.permute.xlu0 %371
    %v374 = vmul.f32 %v364, %v372
    %376 = vrot.lane.b32.xlu0 %v374, 32
    %v377 = vpop.permute.xlu0 %376
    %v379 = vadd.f32 %v369, %v377
    %v380 = vtanh.pop %v379
    %382 = vrot.lane.b32.xlu0 %v380, 64
    %v383 = vpop.permute.xlu0 %382
    %v385 = vmul.f32 %v364, %v383
    %387 = vrot.lane.b32.xlu0 %v385, 32
    %v388 = vpop.permute.xlu0 %387
    %s390 = scalar_lea.vmem [#allocation8], 8
    %391 = vst.msk [vmem:[%s390] sm:$0xff] %vm138, %v388
    %393 = vrot.lane.b32.xlu0 %v379, 96
    %v394 = vpop.permute.xlu0 %393
    %s396 = scalar_lea.vmem [#allocation10], 8
    %397 = vst.msk [vmem:[%s396] sm:$0xff] %vm138, %v394
    %v398 = vpack.c.bf16 %v385, %v385
    %v399 = vld [vmem:[%s7] sm:$0xf]
    %v400 = vld [vmem:[%s7 + $0x4] sm:$0xf]
    %v401 = vld [vmem:[%s7 + $0x8] sm:$0xf]
    %v402 = vld [vmem:[%s7 + $0xc] sm:$0xf]
    %v403 = vld [vmem:[%s8] sm:$0x1]
    %v405 = vlaneseq
    %v406 = vshrl.u32 %v405, 7
    %v407 = vsub.s32 0, %v406
    %v408 = vrot.slane %v403, %v407
    %411 = vrot.lane.b32.xlu0 %v398, 32
    %v412 = vpop.permute.xlu0 %411
    %v417 = vunpack.c.l.b16 %v399
    %v418 = vunpack.c.l.b16 %v400
    %v419 = vunpack.c.l.b16 %v401
    %v420 = vunpack.c.l.b16 %v402
    %v421 = vpack.c.b16 %v418, %v417
    %v422 = vpack.c.b16 %v420, %v419
    %v426 = vsel %vm138, %v412, 0
    %428 = vmatprep.subr.bf16.mxu0 0
    %429 = vmatpush1.bf16.msra.mxu0 0
    %430 = vmatprep.subr.bf16.mxu0 0
    %431 = vmatpush1.bf16.msra.mxu0 0
    %432 = vmatprep.subr.bf16.mxu0 0
    %433 = vmatpush1.bf16.msra.mxu0 0
    %434 = vmatprep.subr.bf16.mxu0 0
    %435 = vmatpush1.bf16.msra.mxu0 0
    %436 = vmatprep.subr.bf16.mxu0 0
    %437 = vmatpush1.bf16.msra.mxu0 0
    %438 = vmatprep.subr.bf16.mxu0 0
    %439 = vmatpush1.bf16.msra.mxu0 0
    %440 = vmatprep.subr.bf16.mxu0 0
    %441 = vmatpush1.bf16.msra.mxu0 %v422
    %442 = vmatprep.subr.bf16.mxu0 0
    %443 = vmatpush1.bf16.msra.mxu0 %v421
    %444 = vmatprep.subr.bf16.mxu0 0
    %445 = vmatpush2.bf16.msra.mxu0 0
    %446 = vmatprep.subr.bf16.mxu0 0
    %447 = vmatpush2.bf16.msra.mxu0 0
    %448 = vmatprep.subr.bf16.mxu0 0
    %449 = vmatpush2.bf16.msra.mxu0 0
    %450 = vmatprep.subr.bf16.mxu0 0
    %451 = vmatpush2.bf16.msra.mxu0 0
    %452 = vmatprep.subr.bf16.mxu0 0
    %453 = vmatpush2.bf16.msra.mxu0 0
    %454 = vmatprep.subr.bf16.mxu0 0
    %455 = vmatpush2.bf16.msra.mxu0 0
    %456 = vmatprep.subr.bf16.mxu0 0
    %457 = vmatpush2.bf16.msra.mxu0 0
    %458 = vmatprep.subr.bf16.mxu0 0
    %459 = vmatpush2.bf16.msra.mxu0 0
    %460 = vmatprep.mubr.bf16.mxu0 0
    %461 = vmatmul.mubr.bf16.gmra.mxu0 %v426
    %v462 = vpop.f32.mrf.mxu0
    %v463 = vadd.f32 %v408, %v462
    %v464 = vpop.f32.mrf.mxu0
    %v465 = vpop.f32.mrf.mxu0
    %v466 = vpop.f32.mrf.mxu0
    %467 = vdwg.mxu0
    %v468 = vtanh.pop %v463
    %vm469 = vcmask 64512
    %470 = vst.msk [vmem:[#allocation7] sm:$0xff] %vm469, %v468
    // Predicated region
    $region46: #{tpu_custom_call.1} parent=1 // pred_check
      _
    $region47: #{tpu_custom_call.1} parent=1 // pred_check_branch
      %472 = sbr.rel (0) target = $region49
    $region48: #{tpu_custom_call.1} parent=1 // pred_region
      %s474 = ssub.s32 128, 128
      %475 = vsyncadd [#allocation4], %s474
      %s477 = sshll.u32 [#allocation7], 4
      %s478 = int_to_ptr.vmem [resolvable:$true] %s477
      %480 = dma.vmem_to_hbm [thread:$0]  %s478, 128, %s9, [#allocation4]
    $region49: #{tpu_custom_call.1} parent=1 // pred_fallthru
      _
    // Predicated region
    $region50: #{tpu_custom_call.1} parent=1 // pred_check
      _
    $region51: #{tpu_custom_call.1} parent=1 // pred_check_branch
      %482 = sbr.rel (0) target = $region53
    $region52: #{tpu_custom_call.1} parent=1 // pred_region
      %s484 = ssub.s32 256, 256
      %485 = vsyncadd [#allocation9], %s484
      %s486 = sshll.u32 [#allocation8], 4
      %s487 = int_to_ptr.vmem [resolvable:$true] %s486
      %492 = dma.vmem_to_hbm [thread:$0]  %s487, 256, %s10, [#allocation9], 128, 128, 8
    $region53: #{tpu_custom_call.1} parent=1 // pred_fallthru
      _
    // Predicated region
    $region54: #{tpu_custom_call.1} parent=1 // pred_check
      _
    $region55: #{tpu_custom_call.1} parent=1 // pred_check_branch
      %494 = sbr.rel (0) target = $region57
    $region56: #{tpu_custom_call.1} parent=1 // pred_region
      %s496 = ssub.s32 256, 256
      %497 = vsyncadd [#allocation9], %s496
      %s498 = sshll.u32 [#allocation10], 4
      %s499 = int_to_ptr.vmem [resolvable:$true] %s498
      %504 = dma.vmem_to_hbm [thread:$0]  %s499, 256, %s11, [#allocation9], 128, 128, 8
    $region57: #{tpu_custom_call.1} parent=1 // pred_fallthru
      _
    // Predicated region
    $region58: #{tpu_custom_call.1} parent=1 // pred_check
      _
    $region59: #{tpu_custom_call.1} parent=1 // pred_check_branch
      %506 = sbr.rel (0) target = $region61
    $region60: #{tpu_custom_call.1} parent=1 // pred_region
      %507 = dma.done [#allocation4], 128
    $region61: #{tpu_custom_call.1} parent=1 // pred_fallthru
      _
    // Predicated region
    $region62: #{tpu_custom_call.1} parent=1 // pred_check
      _
    $region63: #{tpu_custom_call.1} parent=1 // pred_check_branch
      %509 = sbr.rel (0) target = $region65
    $region64: #{tpu_custom_call.1} parent=1 // pred_region
      %510 = dma.done [#allocation9], 256
    $region65: #{tpu_custom_call.1} parent=1 // pred_fallthru
      _
    // Predicated region
    $region66: #{tpu_custom_call.1} parent=1 // pred_check
      _
    $region67: #{tpu_custom_call.1} parent=1 // pred_check_branch
      %512 = sbr.rel (0) target = $region69
    $region68: #{tpu_custom_call.1} parent=1 // pred_region
      %513 = dma.done [#allocation9], 256
    $region69: #{tpu_custom_call.1} parent=1 // pred_fallthru
      _
    %514 = vsyncpa [#allocation3], 1
    %515 = vsyncpa [#allocation6], 1
    %516 = vsyncpa [#allocation4], 1
    %517 = vsyncpa [#allocation9], 1

</llo_original>
